<compile_context>
chip_gen: v5e
topology: v5e:2x2
jax: 0.10.0
libtpu: 0.0.40
codegen_flags: <defaults>
</compile_context>

<pallas_src>
import math

import numpy as np
import jax
import jax.numpy as jnp
from jax.experimental import pallas as pl
from jax.experimental.pallas import tpu as pltpu


def _round_up(x, m):
    return ((x + m - 1) // m) * m


def _physical_vmem_bytes():
    """Physical VMEM per TensorCore (v5e/v6e: 128 MiB, v7x: 64 MiB)."""
    phys = None
    try:
        phys = int(getattr(pltpu.get_tpu_info(), "vmem_capacity_bytes", 0)) or None
    except Exception:
        phys = None
    kind = ""
    try:
        kind = jax.devices()[0].device_kind.lower()
    except Exception:
        pass
    by_kind = 64 * 1024 * 1024 if ("v7" in kind or "7x" in kind) else 128 * 1024 * 1024
    return min(phys, by_kind) if phys else by_kind


def _pick_tile(n, target):
    """Largest divisor of n that is <= target, preferring multiples of 256
    (MXU-aligned on v6e/v7x) and falling back to multiples of 128."""
    for align in (256, 128):
        t = (min(target, n) // align) * align
        while t >= align:
            if n % t == 0:
                return t
            t -= align
    return n


def _block_sparse_plan(adj_padded, tn, tk):
    """Host-side block-sparsity plan: per row-block count of nonzero k-tiles and
    their tile indices (padded by repeating the last valid index so the pipeline
    skips redundant DMAs on padded steps).  Requires a concrete adjacency.
    # TODO(synk): precompute and pass the plan explicitly when calling under jit.
    """
    a = np.asarray(jax.device_get(adj_padded)).astype(np.float32)
    n_pad = a.shape[0]
    nb_i, nb_k = n_pad // tn, n_pad // tk
    mask = (a.reshape(nb_i, tn, nb_k, tk) != 0.0).any(axis=(1, 3))
    counts = mask.sum(axis=1).astype(np.int32)
    mt = int(max(1, counts.max()))
    idx = np.zeros((nb_i, mt), dtype=np.int32)
    for bi in range(nb_i):
        nz = np.flatnonzero(mask[bi]).astype(np.int32)
        if nz.size:
            idx[bi, :nz.size] = nz
            idx[bi, nz.size:] = nz[-1]
    return jnp.asarray(counts), jnp.asarray(idx.reshape(-1)), mt


def _make_gcn_kernel(*, add_self, use_bias, h_resident, sparse, use_scratch,
                     tn, tk, mt):
    """acc += A_blk @ H_blk ; epilogue adds self rows / bias, relu, store."""

    def kernel(*refs):
        it = iter(refs)
        cnt_ref = next(it) if sparse else None      # (nb_i,)           SMEM
        idx_ref = next(it) if sparse else None      # (nb_i * mt,)      SMEM
        adj_ref = next(it)                          # (tn, tk)          streamed
        h_ref = next(it)                            # resident: (N, F) / streamed: (tk, F)
        h_self_ref = next(it) if (add_self and not h_resident) else None
        b_ref = next(it) if use_bias else None      # (1, F)
        out_ref = next(it)                          # (tn, F)  resident across k
        acc_ref = next(it) if use_scratch else out_ref

        i = pl.program_id(0)
        k = pl.program_id(1)

        @pl.when(k == 0)
        def _init():
            acc_ref[...] = jnp.zeros_like(acc_ref)

        def _accumulate():
            if h_resident:
                kt = idx_ref[i * mt + k] if sparse else k
                start = pl.multiple_of(kt * tk, tk)
                h_blk = h_ref[pl.ds(start, tk), :]
            else:
                h_blk = h_ref[...]
            acc_ref[...] += jnp.dot(adj_ref[...], h_blk,
                                    preferred_element_type=jnp.float32)

        if sparse:
            @pl.when(k < cnt_ref[i])
            def _():
                _accumulate()
        else:
            _accumulate()

        @pl.when(k == pl.num_programs(1) - 1)
        def _epilogue():
            y = acc_ref[...]
            if add_self:
                if h_resident:
                    r0 = pl.multiple_of(i * tn, tn)
                    y = y + h_ref[pl.ds(r0, tn), :].astype(jnp.float32)
                else:
                    y = y + h_self_ref[...].astype(jnp.float32)
            if use_bias:
                y = y + b_ref[...].astype(jnp.float32)
            out_ref[...] = jnp.maximum(y, 0.0).astype(out_ref.dtype)

    return kernel


def graph_convolution(inputs, normalized_adjacency, weights, bias=None, *,
                      add_self=False, row_tile=None, k_tile=None,
                      stream_dtype=jnp.bfloat16, block_sparse=False,
                      keep_padded_features=False, adj_buffer_count=None):
    """Pallas GCN forward: relu((A @ X [+ X]) @ W [+ b]) == relu(A @ H [+ H] [+ b]).

    * A and H stream in `stream_dtype` (default bf16) with f32 accumulation;
      pass a pre-cast adjacency to avoid a per-call N^2 cast pass.
    * H is kept fully resident in VMEM when it fits the budget.
    * `block_sparse=True` skips all-zero (row-block, k-tile) adjacency tiles.
    * `keep_padded_features=True` keeps the lane-dense 128-padded feature axis
      (useful when chaining layers); default slices to the module's F_out.
    """
    n, f_in = inputs.shape
    f_out = weights.shape[1]
    assert normalized_adjacency.shape == (n, n)
    assert weights.shape == (f_in, f_out)
    use_bias = bias is not None

    out_dtype = jnp.dtype(inputs.dtype)
    stream_dtype = jnp.dtype(stream_dtype)
    use_scratch = out_dtype != jnp.float32   # f32 outputs accumulate in place

    # Lane-dense output and 128-aligned contraction axis.
    f_pad = _round_up(f_out, 128)
    n_pad = _round_up(n, 128)

    # H = X @ W computed once in f32, streamed in stream_dtype.
    w_pad = weights if f_pad == f_out else jnp.pad(weights, ((0, 0), (0, f_pad - f_out)))
    h = jnp.dot(inputs.astype(jnp.float32), w_pad.astype(jnp.float32),
                preferred_element_type=jnp.float32).astype(stream_dtype)

    adj = normalized_adjacency
    if adj.dtype != stream_dtype:
        # NOTE: cast A once upstream and reuse it across layers to avoid paying
        # this extra N^2 HBM pass per call (the demo below does exactly that).
        adj = adj.astype(stream_dtype)
    if n_pad != n:
        adj = jnp.pad(adj, ((0, n_pad - n), (0, n_pad - n)))
        h = jnp.pad(h, ((0, n_pad - n), (0, 0)))

    b = None
    if use_bias:
        b = bias.reshape(1, f_out).astype(jnp.float32)
        if f_pad != f_out:
            b = jnp.pad(b, ((0, 0), (0, f_pad - f_out)))

    # --- Tile / VMEM policy: per-generation budget with headroom -------------
    budget = int(0.75 * _physical_vmem_bytes())   # ~48 MiB v7x, ~96 MiB v5e/v6e
    sb, ob = stream_dtype.itemsize, out_dtype.itemsize

    def _need(tn_, tk_, resident):
        v = 2 * tn_ * tk_ * sb + 2 * tn_ * f_pad * ob      # A stream + out (x2 buffers)
        v += tn_ * f_pad * 4 if use_scratch else 0          # f32 accumulator
        v += 2 * f_pad * 4 if use_bias else 0                # bias
        if resident:
            return v + 2 * n_pad * f_pad * sb                # resident H
        return v + 2 * tk_ * f_pad * sb + (2 * tn_ * f_pad * sb if add_self else 0)

    # Row tile capped at n_pad//2 so the "parallel" axis splits across 2 cores.
    tn = row_tile if row_tile is not None else _pick_tile(n_pad, min(256, max(128, n_pad // 2)))
    tk = k_tile if k_tile is not None else _pick_tile(n_pad, 512)
    assert n_pad % tn == 0 and tn % 128 == 0, "row_tile must be a multiple of 128 dividing padded N"
    assert n_pad % tk == 0 and tk % 128 == 0, "k_tile must be a multiple of 128 dividing padded N"

    if row_tile is None and k_tile is None:
        while _need(tn, tk, False) > budget and (tk > 128 or tn > 128):
            if tk > 128:
                tk = _pick_tile(n_pad, max(128, tk // 2))
            else:
                tn = _pick_tile(n_pad, max(128, tn // 2))

    h_resident = _need(tn, tk, True) <= int(0.7 * budget)
    need = _need(tn, tk, h_resident)
    vmem_limit = int(min(budget, max(int(1.5 * need) + (4 << 20), 32 << 20)))

    # --- Block-sparse plan (optional) ----------------------------------------
    sparse = bool(block_sparse)
    cnt_arr = idx_arr = None
    mt = None
    if sparse:
        cnt_arr, idx_arr, mt = _block_sparse_plan(adj, tn, tk)

    nb_i = n_pad // tn
    grid = (nb_i, mt if sparse else n_pad // tk)

    if sparse:
        adj_map = lambda i, k, cnt, idx: (i, idx[i * mt + k])
        h_res_map = lambda i, k, cnt, idx: (0, 0)
        h_blk_map = lambda i, k, cnt, idx: (idx[i * mt + k], 0)
        h_self_map = lambda i, k, cnt, idx: (i, 0)
        fixed_map = lambda i, k, cnt, idx: (0, 0)
        out_map = lambda i, k, cnt, idx: (i, 0)
    else:
        adj_map = lambda i, k: (i, k)
        h_res_map = lambda i, k: (0, 0)
        h_blk_map = lambda i, k: (k, 0)
        h_self_map = lambda i, k: (i, 0)
        fixed_map = lambda i, k: (0, 0)
        out_map = lambda i, k: (i, 0)

    adj_kwargs = {}
    if adj_buffer_count is not None:          # deepen A's pipeline if DMA is exposed
        adj_kwargs["pipeline_mode"] = pl.Buffered(adj_buffer_count)

    in_specs = [pl.BlockSpec((tn, tk), adj_map, **adj_kwargs)]
    operands = [adj]
    if h_resident:
        in_specs.append(pl.BlockSpec((n_pad, f_pad), h_res_map))   # fetched once
        operands.append(h)
    else:
        in_specs.append(pl.BlockSpec((tk, f_pad), h_blk_map))
        operands.append(h)
        if add_self:
            in_specs.append(pl.BlockSpec((tn, f_pad), h_self_map))
            operands.append(h)
    if use_bias:
        in_specs.append(pl.BlockSpec((1, f_pad), fixed_map))
        operands.append(b)

    scratch_shapes = [pltpu.VMEM((tn, f_pad), jnp.float32)] if use_scratch else []

    kernel = _make_gcn_kernel(add_self=add_self, use_bias=use_bias,
                              h_resident=h_resident, sparse=sparse,
                              use_scratch=use_scratch, tn=tn, tk=tk,
                              mt=(mt or 0))

    call = pl.pallas_call(
        kernel,
        out_shape=jax.ShapeDtypeStruct((n_pad, f_pad), out_dtype),
        grid_spec=pltpu.PrefetchScalarGridSpec(
            num_scalar_prefetch=2 if sparse else 0,
            grid=grid,
            in_specs=in_specs,
            out_specs=pl.BlockSpec((tn, f_pad), out_map),
            scratch_shapes=scratch_shapes,
        ),
        compiler_params=pltpu.CompilerParams(
            dimension_semantics=("parallel", "arbitrary"),
            vmem_limit_bytes=vmem_limit,
        ),
    )

    out = call(cnt_arr, idx_arr, *operands) if sparse else call(*operands)

    if n_pad != n:
        out = out[:n]
    if not keep_padded_features and f_pad != f_out:
        out = out[:, :f_out]
    return out


def init_params(key, input_dimension, output_dimension, use_bias, dtype=jnp.float32):
    """Xavier-uniform(gain=1.414) weights, normal bias (matches the PyTorch module)."""
    kw, kb = jax.random.split(key)
    gain = 1.414
    bound = gain * math.sqrt(6.0 / (input_dimension + output_dimension))
    weights = jax.random.uniform(kw, (input_dimension, output_dimension),
                                 minval=-bound, maxval=bound, dtype=dtype)
    bias = jax.random.normal(kb, (output_dimension,), dtype=dtype) if use_bias else None
    return weights, bias


def reference_gcn(inputs, adj, weights, bias, add_self):
    before = adj @ inputs
    if add_self:
        before = before + inputs
    y = before @ weights
    if bias is not None:
        y = y + bias
    return jnp.maximum(y, 0.0)


if __name__ == "__main__":
    key = jax.random.PRNGKey(0)
    k_adj, k_x, k_p, k_bd = jax.random.split(key, 4)

    # Small graph: 256 nodes, 48 in-features, 96 out-features
    # (F_out intentionally not a multiple of 128 to exercise lane padding).
    N, F_IN, F_OUT = 256, 48, 96

    x = jax.random.normal(k_x, (N, F_IN), dtype=jnp.float32)

    # Symmetric, row-normalized adjacency.
    a_raw = (jax.random.uniform(k_adj, (N, N)) < 0.05).astype(jnp.float32)
    a_sym = jnp.maximum(a_raw, a_raw.T) + jnp.eye(N, dtype=jnp.float32)
    adj = a_sym / a_sym.sum(axis=1, keepdims=True)

    # Cast A once upstream (bf16 streaming is the default) and reuse it.
    adj_bf16 = adj.astype(jnp.bfloat16)

    weights, bias = init_params(k_p, F_IN, F_OUT, use_bias=True)

    # --- Config 1: default bf16 streaming, resident H, self-add + bias ------
    out1 = jax.block_until_ready(
        graph_convolution(x, adj_bf16, weights, bias, add_self=True))
    ref1 = reference_gcn(x, adj, weights, bias, True)
    assert out1.shape == (N, F_OUT)
    assert jnp.allclose(out1.astype(jnp.float32), ref1, atol=0.1, rtol=0.1), \
        "bf16 mismatch vs reference (config 1)"

    # --- Config 2: f32 streams, tight tolerance, no self-add / no bias ------
    out2 = jax.block_until_ready(
        graph_convolution(x, adj, weights, None, add_self=False,
                          stream_dtype=jnp.float32))
    ref2 = reference_gcn(x, adj, weights, None, False)
    assert out2.shape == (N, F_OUT)
    assert jnp.allclose(out2, ref2, atol=2e-3, rtol=2e-3), \
        "f32 mismatch vs reference (config 2)"

    # --- Config 3: block-sparse tile skipping on a block-structured graph ---
    allowed = jnp.zeros((N, N), dtype=bool).at[:128, :128].set(True).at[128:, :].set(True)
    a_bd = jnp.where(allowed, jax.random.uniform(k_bd, (N, N)) < 0.05, False)
    a_bd = a_bd.astype(jnp.float32) + jnp.eye(N, dtype=jnp.float32)
    adj_bd = a_bd / a_bd.sum(axis=1, keepdims=True)
    adj_bd_bf16 = adj_bd.astype(jnp.bfloat16)

    out3 = jax.block_until_ready(
        graph_convolution(x, adj_bd_bf16, weights, bias, add_self=True,
                          row_tile=128, k_tile=128, block_sparse=True))
    ref3 = reference_gcn(x, adj_bd, weights, bias, True)
    assert out3.shape == (N, F_OUT)
    assert jnp.allclose(out3.astype(jnp.float32), ref3, atol=0.1, rtol=0.1), \
        "block-sparse mismatch vs reference (config 3)"

    print("KERNEL_OK")
</pallas_src>

<mosaic_0001>
module attributes {stable_mosaic.version = 11 : i64} {
  func.func @kernel(%arg0: i32, %arg1: i32, %arg2: memref<128x256xbf16, #tpu.memory_space<vmem>>, %arg3: memref<256x128xbf16, #tpu.memory_space<vmem>>, %arg4: memref<1x128xf32, #tpu.memory_space<vmem>>, %arg5: memref<128x128xf32, #tpu.memory_space<vmem>>) attributes {dimension_semantics = [#tpu.dimension_semantics<parallel>, #tpu.dimension_semantics<arbitrary>], iteration_bounds = array<i64: 2, 1>, scalar_prefetch = 0 : i64, scratch_operands = 0 : i64, tpu.core_type = #tpu.core_type<tc>, window_params = [{transform_indices = @transform_0, window_bounds = array<i64: 128, 256>}, {pipeline_mode = #tpu.pipeline_mode<synchronous>, transform_indices = @transform_1, window_bounds = array<i64: 256, 128>}, {pipeline_mode = #tpu.pipeline_mode<synchronous>, transform_indices = @transform_2, window_bounds = array<i64: 1, 128>}, {transform_indices = @transform_3, window_bounds = array<i64: 128, 128>}]} {
    %c0_i32 = arith.constant 0 : i32
    %0 = arith.cmpi eq, %arg1, %c0_i32 : i32
    %1 = arith.extui %0 : i1 to i32
    %c0_i32_0 = arith.constant 0 : i32
    %2 = arith.cmpi ne, %1, %c0_i32_0 : i32
    scf.if %2 {
      %cst_9 = arith.constant 0.000000e+00 : f32
      %15 = vector.broadcast %cst_9 : f32 to vector<128x128xf32>
      %c0_10 = arith.constant 0 : index
      %c0_11 = arith.constant 0 : index
      %16 = vector.load %arg5[%c0_10, %c0_11] : memref<128x128xf32, #tpu.memory_space<vmem>>, vector<128x128xf32>
      tpu.vector_store %arg5[%c0_10, %c0_11], %15 {strides = array<i32>} : memref<128x128xf32, #tpu.memory_space<vmem>>, vector<128x128xf32>,
    } else {
    }
    %c256_i32 = arith.constant 256 : i32
    %3 = arith.muli %arg1, %c256_i32 : i32
    %4 = tpu.assume_multiple %3, 256 : i32
    %5 = arith.index_cast %4 : i32 to index
    %c0 = arith.constant 0 : index
    %6 = vector.load %arg3[%5, %c0] : memref<256x128xbf16, #tpu.memory_space<vmem>>, vector<256x128xbf16>
    %c0_1 = arith.constant 0 : index
    %c0_2 = arith.constant 0 : index
    %7 = vector.load %arg5[%c0_1, %c0_2] : memref<128x128xf32, #tpu.memory_space<vmem>>, vector<128x128xf32>
    %c0_3 = arith.constant 0 : index
    %c0_4 = arith.constant 0 : index
    %8 = vector.load %arg2[%c0_3, %c0_4] : memref<128x256xbf16, #tpu.memory_space<vmem>>, vector<128x256xbf16>
    %cst = arith.constant dense<0.000000e+00> : vector<128x128xf32>
    %9 = tpu.matmul %8, %6, %cst {dimension_numbers = #tpu.dot_dimension_numbers<[1], [0], [0], [1], [0, 0, 1, 1], [], []>} : vector<128x256xbf16>, vector<256x128xbf16>, vector<128x128xf32> -> vector<128x128xf32>
    %10 = arith.addf %7, %9 : vector<128x128xf32>
    %c0_5 = arith.constant 0 : index
    %c0_6 = arith.constant 0 : index
    %11 = vector.load %arg5[%c0_5, %c0_6] : memref<128x128xf32, #tpu.memory_space<vmem>>, vector<128x128xf32>
    tpu.vector_store %arg5[%c0_5, %c0_6], %10 {strides = array<i32>} : memref<128x128xf32, #tpu.memory_space<vmem>>, vector<128x128xf32>,
    %c0_i32_7 = arith.constant 0 : i32
    %12 = arith.cmpi eq, %arg1, %c0_i32_7 : i32
    %13 = arith.extui %12 : i1 to i32
    %c0_i32_8 = arith.constant 0 : i32
    %14 = arith.cmpi ne, %13, %c0_i32_8 : i32
    scf.if %14 {
      %c0_9 = arith.constant 0 : index
      %c0_10 = arith.constant 0 : index
      %15 = vector.load %arg5[%c0_9, %c0_10] : memref<128x128xf32, #tpu.memory_space<vmem>>, vector<128x128xf32>
      %c128_i32 = arith.constant 128 : i32
      %16 = arith.muli %arg0, %c128_i32 : i32
      %17 = tpu.assume_multiple %16, 128 : i32
      %18 = arith.index_cast %17 : i32 to index
      %c0_11 = arith.constant 0 : index
      %19 = vector.load %arg3[%18, %c0_11] : memref<256x128xbf16, #tpu.memory_space<vmem>>, vector<128x128xbf16>
      %20 = arith.extf %19 : vector<128x128xbf16> to vector<128x128xf32>
      %21 = arith.addf %15, %20 : vector<128x128xf32>
      %c0_12 = arith.constant 0 : index
      %c0_13 = arith.constant 0 : index
      %22 = vector.load %arg4[%c0_12, %c0_13] : memref<1x128xf32, #tpu.memory_space<vmem>>, vector<1x128xf32>
      %23 = vector.broadcast %22 : vector<1x128xf32> to vector<128x128xf32>
      %24 = arith.addf %21, %23 : vector<128x128xf32>
      %cst_14 = arith.constant 0.000000e+00 : f32
      %25 = vector.broadcast %cst_14 : f32 to vector<128x128xf32>
      %26 = arith.maximumf %24, %25 : vector<128x128xf32>
      %c0_15 = arith.constant 0 : index
      %c0_16 = arith.constant 0 : index
      %27 = vector.load %arg5[%c0_15, %c0_16] : memref<128x128xf32, #tpu.memory_space<vmem>>, vector<128x128xf32>
      tpu.vector_store %arg5[%c0_15, %c0_16], %26 {strides = array<i32>} : memref<128x128xf32, #tpu.memory_space<vmem>>, vector<128x128xf32>,
    } else {
    }
    return
  }
  func.func @transform_0(%arg0: i32, %arg1: i32) -> (i32, i32) {
    %c0_i32 = arith.constant 0 : i32
    return %arg0, %arg1 : i32, i32
  }
  func.func @transform_1(%arg0: i32, %arg1: i32) -> (i32, i32) {
    %c0_i32 = arith.constant 0 : i32
    %c0_i32_0 = arith.constant 0 : i32
    %c0_i32_1 = arith.constant 0 : i32
    return %c0_i32, %c0_i32_0 : i32, i32
  }
  func.func @transform_2(%arg0: i32, %arg1: i32) -> (i32, i32) {
    %c0_i32 = arith.constant 0 : i32
    %c0_i32_0 = arith.constant 0 : i32
    %c0_i32_1 = arith.constant 0 : i32
    return %c0_i32, %c0_i32_0 : i32, i32
  }
  func.func @transform_3(%arg0: i32, %arg1: i32) -> (i32, i32) {
    %c0_i32 = arith.constant 0 : i32
    %c0_i32_0 = arith.constant 0 : i32
    return %arg0, %c0_i32 : i32, i32
  }
}

</mosaic_0001>

<llo_original>
// kernel: tpu_custom_call.1
$region0: #{tpu_custom_call.1}
  #allocation0 [shape = 'u32[]', space=smem, size = 0x4, offset = 0x4, fixed_abs, tag = 'smem constant byte address 0x4 - core index']
  #allocation1 [shape = 'u32[72,128]{1,0:T(1,128)}', space=vmem, size = 0x9000, scoped, tag = 'internal scratch']
  %s0 = inlined_call_operand.hbm [shape: bf16[256,256], index: 0, kind: input, shape index: {}]
  %s1 = inlined_call_operand.hbm [shape: bf16[256,128], index: 1, kind: input, shape index: {}]
  %s2 = inlined_call_operand.vmem [shape: f32[1,128], index: 2, kind: input, shape index: {}]
  %s3 = inlined_call_operand.hbm [shape: f32[256,128], index: 3, kind: output, shape index: {}]
  %s4 = sld [smem:[#allocation0]]
  $region61: #{tpu_custom_call.1} parent=0
    _
  %s6 = ssub.s32 1, %s4
  %s7 = scalar_select 0, %s6, %s4
  $region1: #{tpu_custom_call.1} parent=0
    #allocation2 [shape = 'u8[131072]{0}', space=vmem, size = 0x20000, scoped, tag = 'input window, operand 0']
    #allocation3 [shape = 's32[2]{0}', space=sflag, size = 0x8, scoped, tag = 'scoped memory for tpu_custom_call.1']
    #allocation4 [shape = 's32[2]{0}', space=sflag, size = 0x8, scoped, tag = 'scoped memory for tpu_custom_call.1']
    #allocation5 [shape = 'u8[65536]{0}', space=vmem, size = 0x10000, scoped, tag = 'input window, operand 1, single buffered']
    #allocation6 [shape = 's32[1]{0}', space=sflag, size = 0x4, scoped, tag = 'scoped memory for tpu_custom_call.1']
    #allocation7 [shape = 'u8[131072]{0}', space=vmem, size = 0x20000, scoped, tag = 'output window, operand 0']
    %8 = vsyncpa [#allocation3], 0
    %s9 = scalar_lea.sflag [#allocation3], 1
    %10 = vsyncpa %s9, 0
    %11 = vsyncpa [#allocation6], 0
    %12 = vsyncpa [#allocation4], 0
    %s13 = scalar_lea.sflag [#allocation4], 1
    %14 = vsyncpa %s13, 0
    loop: start=0, step=1, limit=4
    $region2: #{tpu_custom_call.1} parent=1 // loop_pre_header
      _
    $region3: #{tpu_custom_call.1} parent=1 // loop_header
      %s16 = sphi 0, %s20
      %p17 = scmp.ge.s32.totalorder %s16, 4
      %s23 = sphi 0, %s35
      %s24 = sphi 0, %s31
      %s25 = sphi 0, %s23
      %s26 = sphi 0, %s24
      %s27 = sphi 0, %s25
      %s28 = sphi 0, %s26
      %s40 = sphi 0, %s42
      %s43 = sphi 0, %s40
      %s44 = sphi 0, %s43
      %s60 = sphi 0, %s44
      %s64 = sphi 0, %s64
      %s66 = sphi 0, %s64
      %s67 = sphi 0, %s66
      %s81 = sphi 0, %s67
      %s85 = sphi 0, %s85
      %s87 = sphi 0, %s85
      %s88 = sphi 0, %s87
      %s102 = sphi 0, %s88
      %s108 = sphi 0, %s110
      %s111 = sphi 0, %s108
      %s112 = sphi 0, %s111
      %s128 = sphi 0, %s112
    $region4: #{tpu_custom_call.1} parent=1 // loop_header_branch
      %19 = sbr.rel (%p17) target = $region8
    $region5: #{tpu_custom_call.1} parent=1 // loop_body
      %s21 = ssub.s32 %s16, 1
      %s22 = ssub.s32 %s16, 2
      %s29 = sadd.s32 1, %s24
      %p30 = scmp.ge.s32.totalorder %s29, 1
      %s31 = scalar_select %p30, 0, %s29
      %s32 = sadd.s32 1, %s23
      %s33 = scalar_select %p30, %s32, %s23
      %p34 = scmp.ge.s32.totalorder %s33, 2
      %s35 = scalar_select %p34, 0, %s33
      %s36 = ssub.s32 %s23, %s35
      %s37 = ssub.s32 %s24, %s31
      %s38 = sor.u32 %s36, %s37
      %p39 = scmp.eq.s32.totalorder %s38, 0
      %s41 = sadd.s32 %s40, 1
      %s42 = scalar_select %p39, %s40, %s41
      %p45 = pneg %p39
      %p46 = scmp.eq.s32.totalorder %s16, 1
      %p47 = por %p45, %p46
      %p48 = scmp.ne.s32.totalorder %s40, %s43
      %p49 = scmp.eq.s32.totalorder %s16, 0
      %p50 = por %p48, %p49
      %p51 = scmp.ne.s32.totalorder %s40, %s43
      %p52 = scmp.eq.s32.totalorder %s21, 1
      %p53 = por %p51, %p52
      %p54 = scmp.ne.s32.totalorder %s43, %s44
      %p55 = scmp.eq.s32.totalorder %s21, 0
      %p56 = por %p54, %p55
      %p57 = scmp.ne.s32.totalorder %s43, %s44
      %p58 = scmp.eq.s32.totalorder %s22, 1
      %p59 = por %p57, %p58
      %p61 = scmp.ne.s32.totalorder %s44, %s60
      %p62 = scmp.eq.s32.totalorder %s22, 0
      %p63 = por %p61, %p62
      %s65 = sadd.s32 %s64, 1
      %p68 = scmp.eq.s32.totalorder %s16, 1
      %p69 = scmp.ne.s32.totalorder %s64, %s66
      %p70 = scmp.eq.s32.totalorder %s16, 0
      %p71 = por %p69, %p70
      %p72 = scmp.ne.s32.totalorder %s64, %s66
      %p73 = scmp.eq.s32.totalorder %s21, 1
      %p74 = por %p72, %p73
      %p75 = scmp.ne.s32.totalorder %s66, %s67
      %p76 = scmp.eq.s32.totalorder %s21, 0
      %p77 = por %p75, %p76
      %p78 = scmp.ne.s32.totalorder %s66, %s67
      %p79 = scmp.eq.s32.totalorder %s22, 1
      %p80 = por %p78, %p79
      %p82 = scmp.ne.s32.totalorder %s67, %s81
      %p83 = scmp.eq.s32.totalorder %s22, 0
      %p84 = por %p82, %p83
      %s86 = sadd.s32 %s85, 1
      %p89 = scmp.eq.s32.totalorder %s16, 1
      %p90 = scmp.ne.s32.totalorder %s85, %s87
      %p91 = scmp.eq.s32.totalorder %s16, 0
      %p92 = por %p90, %p91
      %p93 = scmp.ne.s32.totalorder %s85, %s87
      %p94 = scmp.eq.s32.totalorder %s21, 1
      %p95 = por %p93, %p94
      %p96 = scmp.ne.s32.totalorder %s87, %s88
      %p97 = scmp.eq.s32.totalorder %s21, 0
      %p98 = por %p96, %p97
      %p99 = scmp.ne.s32.totalorder %s87, %s88
      %p100 = scmp.eq.s32.totalorder %s22, 1
      %p101 = por %p99, %p100
      %p103 = scmp.ne.s32.totalorder %s88, %s102
      %p104 = scmp.eq.s32.totalorder %s22, 0
      %p105 = por %p103, %p104
      %s106 = ssub.s32 %s23, %s35
      %p107 = scmp.eq.s32.totalorder %s106, 0
      %s109 = sadd.s32 %s108, 1
      %s110 = scalar_select %p107, %s108, %s109
      %p113 = pneg %p107
      %p114 = scmp.eq.s32.totalorder %s16, 1
      %p115 = por %p113, %p114
      %p116 = scmp.ne.s32.totalorder %s108, %s111
      %p117 = scmp.eq.s32.totalorder %s16, 0
      %p118 = por %p116, %p117
      %p119 = scmp.ne.s32.totalorder %s108, %s111
      %p120 = scmp.eq.s32.totalorder %s21, 1
      %p121 = por %p119, %p120
      %p122 = scmp.ne.s32.totalorder %s111, %s112
      %p123 = scmp.eq.s32.totalorder %s21, 0
      %p124 = por %p122, %p123
      %p125 = scmp.ne.s32.totalorder %s111, %s112
      %p126 = scmp.eq.s32.totalorder %s22, 1
      %p127 = por %p125, %p126
      %p129 = scmp.ne.s32.totalorder %s112, %s128
      %p130 = scmp.eq.s32.totalorder %s22, 0
      %p131 = por %p129, %p130
      %p132 = scmp.le.s32.totalorder 1, %s16
      %p133 = scmp.lt.s32.totalorder %s16, 3
      %p134 = pnand %p132, %p133
      %p135 = pneg %p134
      // Predicated region
      $region9: #{tpu_custom_call.1} parent=5 // pred_check
        _
      $region10: #{tpu_custom_call.1} parent=5 // pred_check_branch
        %137 = sbr.rel (%p134) target = $region12
      $region11: #{tpu_custom_call.1} parent=5 // pred_region
        %s138 = ssub.s32 %s16, 1
        // Predicated region
        $region13: #{tpu_custom_call.1} parent=11 // pred_check
          %p139 = pneg %p77
        $region14: #{tpu_custom_call.1} parent=11 // pred_check_branch
          %141 = sbr.rel (%p139) target = $region16
        $region15: #{tpu_custom_call.1} parent=11 // pred_region
          %143 = vsyncadd [#allocation6], 0
          %s144 = sshll.u32 %s1, 4
          %s145 = int_to_ptr.hbm [resolvable:$true] %s144
          %s146 = sshll.u32 [#allocation5], 4
          %s147 = int_to_ptr.vmem [resolvable:$true] %s146
          %152 = dma.hbm_to_vmem [thread:$0]  %s145, 2048, %s147, [#allocation6], 64, 64, 4
        $region16: #{tpu_custom_call.1} parent=11 // pred_fallthru
          _
        // Predicated region
        $region17: #{tpu_custom_call.1} parent=11 // pred_check
          %p153 = pneg %p98
        $region18: #{tpu_custom_call.1} parent=11 // pred_check_branch
          %155 = sbr.rel (%p153) target = $region20
        $region19: #{tpu_custom_call.1} parent=11 // pred_region
          _
        $region20: #{tpu_custom_call.1} parent=11 // pred_fallthru
          _
      $region12: #{tpu_custom_call.1} parent=5 // pred_fallthru
        _
      %p156 = scmp.lt.s32.totalorder %s16, 2
      // Predicated region
      $region21: #{tpu_custom_call.1} parent=5 // pred_check
        %p157 = pneg %p156
      $region22: #{tpu_custom_call.1} parent=5 // pred_check_branch
        %159 = sbr.rel (%p157) target = $region24
      $region23: #{tpu_custom_call.1} parent=5 // pred_region
        // Predicated region
        $region25: #{tpu_custom_call.1} parent=23 // pred_check
          %p160 = pneg %p50
        $region26: #{tpu_custom_call.1} parent=23 // pred_check_branch
          %162 = sbr.rel (%p160) target = $region28
        $region27: #{tpu_custom_call.1} parent=23 // pred_region
          %s163 = sand.u32 %s40, 1
          %s164 = scalar_lea.sflag [#allocation3], %s163
          %s165 = sand.u32 %s40, 1
          %s166 = smul.addr %s165, 128
          %s167 = scalar_lea.vmem [#allocation2], %s166
          %s168 = smul.u32 16, %s23
          %s169 = smul.u32 2, %s24
          %171 = vsyncadd %s164, 0
          %s172 = smul.addr %s168, 2
          %s173 = sadd.s32 %s169, %s172
          %s174 = smul.addr %s173, 4
          %s175 = scalar_lea.hbm %s0, %s174
          %s176 = sshll.u32 %s175, 4
          %s177 = int_to_ptr.hbm [resolvable:$true] %s176
          %s178 = sshll.u32 %s167, 4
          %s179 = int_to_ptr.vmem [resolvable:$true] %s178
          %184 = dma.hbm_to_vmem [thread:$0]  %s177, 2048, %s179, %s164, 128, 128, 8
        $region28: #{tpu_custom_call.1} parent=23 // pred_fallthru
          _
      $region24: #{tpu_custom_call.1} parent=5 // pred_fallthru
        _
      %p185 = scmp.le.s32.totalorder 1, %s16
      %p186 = scmp.lt.s32.totalorder %s16, 3
      %p187 = pnand %p185, %p186
      %p188 = pneg %p187
      // Predicated region
      $region29: #{tpu_custom_call.1} parent=5 // pred_check
        _
      $region30: #{tpu_custom_call.1} parent=5 // pred_check_branch
        %190 = sbr.rel (%p187) target = $region32
      $region31: #{tpu_custom_call.1} parent=5 // pred_region
        %s191 = ssub.s32 %s16, 1
        %s192 = sand.u32 %s43, 1
        %s193 = scalar_lea.sflag [#allocation3], %s192
        %s194 = sand.u32 %s43, 1
        %s195 = smul.addr %s194, 128
        %s196 = scalar_lea.vmem [#allocation2], %s195
        // Predicated region
        $region33: #{tpu_custom_call.1} parent=31 // pred_check
          %p197 = pneg %p56
        $region34: #{tpu_custom_call.1} parent=31 // pred_check_branch
          %199 = sbr.rel (%p197) target = $region36
        $region35: #{tpu_custom_call.1} parent=31 // pred_region
          %201 = dma.done %s193, 2048
        $region36: #{tpu_custom_call.1} parent=31 // pred_fallthru
          _
        // Predicated region
        $region37: #{tpu_custom_call.1} parent=31 // pred_check
          %p202 = pneg %p77
        $region38: #{tpu_custom_call.1} parent=31 // pred_check_branch
          %204 = sbr.rel (%p202) target = $region40
        $region39: #{tpu_custom_call.1} parent=31 // pred_region
          %206 = dma.done [#allocation6], 2048
        $region40: #{tpu_custom_call.1} parent=31 // pred_fallthru
          _
        %s207 = sand.u32 %s43, 1
        %s208 = scalar_lea.sflag [#allocation3], %s207
        %s209 = sand.u32 %s43, 1
        %s210 = smul.addr %s209, 128
        %s211 = scalar_lea.vmem [#allocation2], %s210
        %p212 = pneg %p56
        %p213 = pneg %p53
        %p214 = pneg %p77
        %p215 = pneg %p74
        %p216 = pneg %p98
        %p217 = pneg %p95
        %p218 = pneg %p124
        %p219 = pneg %p121
        %s220 = sand.u32 %s111, 1
        %s221 = scalar_lea.sflag [#allocation4], %s220
        %s222 = sand.u32 %s111, 1
        %s223 = smul.addr %s222, 128
        %s224 = scalar_lea.vmem [#allocation7], %s223
        %s225 = smul.u32 16, %s25
        %s226 = smul.u32 2, %s26
        %s227 = smul.u32 16, %s25
        %p228 = scmp.eq.s32.totalorder %s26, 0
        // Predicated region
        $region41: #{tpu_custom_call.1} parent=31 // pred_check
          %p229 = pneg %p228
        $region42: #{tpu_custom_call.1} parent=31 // pred_check_branch
          %231 = sbr.rel (%p229) target = $region44
        $region43: #{tpu_custom_call.1} parent=31 // pred_region
          %232 = vst [vmem:[%s224] sm:$0xff] 0.0
          %233 = vst [vmem:[%s224 + $0x8] sm:$0xff] 0.0
          %234 = vst [vmem:[%s224 + $0x10] sm:$0xff] 0.0
          %235 = vst [vmem:[%s224 + $0x18] sm:$0xff] 0.0
          %236 = vst [vmem:[%s224 + $0x20] sm:$0xff] 0.0
          %237 = vst [vmem:[%s224 + $0x28] sm:$0xff] 0.0
          %238 = vst [vmem:[%s224 + $0x30] sm:$0xff] 0.0
          %239 = vst [vmem:[%s224 + $0x38] sm:$0xff] 0.0
          %240 = vst [vmem:[%s224 + $0x40] sm:$0xff] 0.0
          %241 = vst [vmem:[%s224 + $0x48] sm:$0xff] 0.0
          %242 = vst [vmem:[%s224 + $0x50] sm:$0xff] 0.0
          %243 = vst [vmem:[%s224 + $0x58] sm:$0xff] 0.0
          %244 = vst [vmem:[%s224 + $0x60] sm:$0xff] 0.0
          %245 = vst [vmem:[%s224 + $0x68] sm:$0xff] 0.0
          %246 = vst [vmem:[%s224 + $0x70] sm:$0xff] 0.0
          %247 = vst [vmem:[%s224 + $0x78] sm:$0xff] 0.0
        $region44: #{tpu_custom_call.1} parent=31 // pred_fallthru
          _
        %s248 = smul.u32 %s26, 256
        %s249 = sshra.s32 %s248, 3
        %s250 = sand.u32 %s248, 7
        %s251 = smul.addr %s249, 4
        %s252 = scalar_lea.vmem [#allocation5], %s251
        %v253 = vld [vmem:[%s252] sm:$0xf]
        %v254 = vld [vmem:[%s252 + $0x4] sm:$0xf]
        %v255 = vld [vmem:[%s252 + $0x8] sm:$0xf]
        %v256 = vld [vmem:[%s252 + $0xc] sm:$0xf]
        %v257 = vld [vmem:[%s252 + $0x10] sm:$0xf]
        %v258 = vld [vmem:[%s252 + $0x14] sm:$0xf]
        %v259 = vld [vmem:[%s252 + $0x18] sm:$0xf]
        %v260 = vld [vmem:[%s252 + $0x1c] sm:$0xf]
        %v261 = vld [vmem:[%s252 + $0x20] sm:$0xf]
        %v262 = vld [vmem:[%s252 + $0x24] sm:$0xf]
        %v263 = vld [vmem:[%s252 + $0x28] sm:$0xf]
        %v264 = vld [vmem:[%s252 + $0x2c] sm:$0xf]
        %v265 = vld [vmem:[%s252 + $0x30] sm:$0xf]
        %v266 = vld [vmem:[%s252 + $0x34] sm:$0xf]
        %v267 = vld [vmem:[%s252 + $0x38] sm:$0xf]
        %v268 = vld [vmem:[%s252 + $0x3c] sm:$0xf]
        %v269 = vld [vmem:[%s252 + $0x40] sm:$0xf]
        %v270 = vld [vmem:[%s252 + $0x44] sm:$0xf]
        %v271 = vld [vmem:[%s252 + $0x48] sm:$0xf]
        %v272 = vld [vmem:[%s252 + $0x4c] sm:$0xf]
        %v273 = vld [vmem:[%s252 + $0x50] sm:$0xf]
        %v274 = vld [vmem:[%s252 + $0x54] sm:$0xf]
        %v275 = vld [vmem:[%s252 + $0x58] sm:$0xf]
        %v276 = vld [vmem:[%s252 + $0x5c] sm:$0xf]
        %v277 = vld [vmem:[%s252 + $0x60] sm:$0xf]
        %v278 = vld [vmem:[%s252 + $0x64] sm:$0xf]
        %v279 = vld [vmem:[%s252 + $0x68] sm:$0xf]
        %v280 = vld [vmem:[%s252 + $0x6c] sm:$0xf]
        %v281 = vld [vmem:[%s252 + $0x70] sm:$0xf]
        %v282 = vld [vmem:[%s252 + $0x74] sm:$0xf]
        %v283 = vld [vmem:[%s252 + $0x78] sm:$0xf]
        %v284 = vld [vmem:[%s252 + $0x7c] sm:$0xf]
        %v285 = vld [vmem:[%s224] sm:$0xff]
        %v286 = vld [vmem:[%s224 + $0x8] sm:$0xff]
        %v287 = vld [vmem:[%s224 + $0x10] sm:$0xff]
        %v288 = vld [vmem:[%s224 + $0x18] sm:$0xff]
        %v289 = vld [vmem:[%s224 + $0x20] sm:$0xff]
        %v290 = vld [vmem:[%s224 + $0x28] sm:$0xff]
        %v291 = vld [vmem:[%s224 + $0x30] sm:$0xff]
        %v292 = vld [vmem:[%s224 + $0x38] sm:$0xff]
        %v293 = vld [vmem:[%s224 + $0x40] sm:$0xff]
        %v294 = vld [vmem:[%s224 + $0x48] sm:$0xff]
        %v295 = vld [vmem:[%s224 + $0x50] sm:$0xff]
        %v296 = vld [vmem:[%s224 + $0x58] sm:$0xff]
        %v297 = vld [vmem:[%s224 + $0x60] sm:$0xff]
        %v298 = vld [vmem:[%s224 + $0x68] sm:$0xff]
        %v299 = vld [vmem:[%s224 + $0x70] sm:$0xff]
        %v300 = vld [vmem:[%s224 + $0x78] sm:$0xff]
        %v301 = vld [vmem:[%s196] sm:$0xff]
        %v302 = vld [vmem:[%s196 + $0x8] sm:$0xff]
        %v303 = vld [vmem:[%s196 + $0x10] sm:$0xff]
        %v304 = vld [vmem:[%s196 + $0x18] sm:$0xff]
        %v305 = vld [vmem:[%s196 + $0x20] sm:$0xff]
        %v306 = vld [vmem:[%s196 + $0x28] sm:$0xff]
        %v307 = vld [vmem:[%s196 + $0x30] sm:$0xff]
        %v308 = vld [vmem:[%s196 + $0x38] sm:$0xff]
        %v309 = vld [vmem:[%s196 + $0x40] sm:$0xff]
        %v310 = vld [vmem:[%s196 + $0x48] sm:$0xff]
        %v311 = vld [vmem:[%s196 + $0x50] sm:$0xff]
        %v312 = vld [vmem:[%s196 + $0x58] sm:$0xff]
        %v313 = vld [vmem:[%s196 + $0x60] sm:$0xff]
        %v314 = vld [vmem:[%s196 + $0x68] sm:$0xff]
        %v315 = vld [vmem:[%s196 + $0x70] sm:$0xff]
        %v316 = vld [vmem:[%s196 + $0x78] sm:$0xff]
        %v333 = vunpack.c.l.b16 %v301
        %v334 = vunpack.c.h.b16 %v301
        %v335 = vunpack.c.l.b16 %v302
        %v336 = vunpack.c.h.b16 %v302
        %v337 = vunpack.c.l.b16 %v303
        %v338 = vunpack.c.h.b16 %v303
        %v339 = vunpack.c.l.b16 %v304
        %v340 = vunpack.c.h.b16 %v304
        %v341 = vunpack.c.l.b16 %v305
        %v342 = vunpack.c.h.b16 %v305
        %v343 = vunpack.c.l.b16 %v306
        %v344 = vunpack.c.h.b16 %v306
        %v345 = vunpack.c.l.b16 %v307
        %v346 = vunpack.c.h.b16 %v307
        %v347 = vunpack.c.l.b16 %v308
        %v348 = vunpack.c.h.b16 %v308
        %v349 = vunpack.c.l.b16 %v309
        %v350 = vunpack.c.h.b16 %v309
        %v351 = vunpack.c.l.b16 %v310
        %v352 = vunpack.c.h.b16 %v310
        %v353 = vunpack.c.l.b16 %v311
        %v354 = vunpack.c.h.b16 %v311
        %v355 = vunpack.c.l.b16 %v312
        %v356 = vunpack.c.h.b16 %v312
        %v357 = vunpack.c.l.b16 %v313
        %v358 = vunpack.c.h.b16 %v313
        %v359 = vunpack.c.l.b16 %v314
        %v360 = vunpack.c.h.b16 %v314
        %v361 = vunpack.c.l.b16 %v315
        %v362 = vunpack.c.h.b16 %v315
        %v363 = vunpack.c.l.b16 %v316
        %v364 = vunpack.c.h.b16 %v316
        %v365 = vpack.c.b16 %v335, %v333
        %v366 = vpack.c.b16 %v336, %v334
        %v367 = vpack.c.b16 %v339, %v337
        %v368 = vpack.c.b16 %v340, %v338
        %v369 = vpack.c.b16 %v343, %v341
        %v370 = vpack.c.b16 %v344, %v342
        %v371 = vpack.c.b16 %v347, %v345
        %v372 = vpack.c.b16 %v348, %v346
        %v373 = vpack.c.b16 %v351, %v349
        %v374 = vpack.c.b16 %v352, %v350
        %v375 = vpack.c.b16 %v355, %v353
        %v376 = vpack.c.b16 %v356, %v354
        %v377 = vpack.c.b16 %v359, %v357
        %v378 = vpack.c.b16 %v360, %v358
        %v379 = vpack.c.b16 %v363, %v361
        %v380 = vpack.c.b16 %v364, %v362
        %v429 = vunpack.c.l.b16 %v253
        %v430 = vunpack.c.l.b16 %v254
        %v431 = vunpack.c.l.b16 %v255
        %v432 = vunpack.c.l.b16 %v256
        %v433 = vunpack.c.l.b16 %v257
        %v434 = vunpack.c.l.b16 %v258
        %v435 = vunpack.c.l.b16 %v259
        %v436 = vunpack.c.l.b16 %v260
        %v437 = vunpack.c.l.b16 %v261
        %v438 = vunpack.c.l.b16 %v262
        %v439 = vunpack.c.l.b16 %v263
        %v440 = vunpack.c.l.b16 %v264
        %v441 = vunpack.c.l.b16 %v265
        %v442 = vunpack.c.l.b16 %v266
        %v443 = vunpack.c.l.b16 %v267
        %v444 = vunpack.c.l.b16 %v268
        %v445 = vunpack.c.l.b16 %v269
        %v446 = vunpack.c.l.b16 %v270
        %v447 = vunpack.c.l.b16 %v271
        %v448 = vunpack.c.l.b16 %v272
        %v449 = vunpack.c.l.b16 %v273
        %v450 = vunpack.c.l.b16 %v274
        %v451 = vunpack.c.l.b16 %v275
        %v452 = vunpack.c.l.b16 %v276
        %v453 = vunpack.c.l.b16 %v277
        %v454 = vunpack.c.l.b16 %v278
        %v455 = vunpack.c.l.b16 %v279
        %v456 = vunpack.c.l.b16 %v280
        %v457 = vunpack.c.l.b16 %v281
        %v458 = vunpack.c.l.b16 %v282
        %v459 = vunpack.c.l.b16 %v283
        %v460 = vunpack.c.l.b16 %v284
        %v461 = vpack.c.b16 %v430, %v429
        %v462 = vpack.c.b16 %v432, %v431
        %v463 = vpack.c.b16 %v434, %v433
        %v464 = vpack.c.b16 %v436, %v435
        %v465 = vpack.c.b16 %v438, %v437
        %v466 = vpack.c.b16 %v440, %v439
        %v467 = vpack.c.b16 %v442, %v441
        %v468 = vpack.c.b16 %v444, %v443
        %v469 = vpack.c.b16 %v446, %v445
        %v470 = vpack.c.b16 %v448, %v447
        %v471 = vpack.c.b16 %v450, %v449
        %v472 = vpack.c.b16 %v452, %v451
        %v473 = vpack.c.b16 %v454, %v453
        %v474 = vpack.c.b16 %v456, %v455
        %v475 = vpack.c.b16 %v458, %v457
        %v476 = vpack.c.b16 %v460, %v459
        %493 = vmatpush.bf16.msra.mxu0 %v468
        %494 = vmatpush.bf16.msra.mxu0 %v467
        %495 = vmatpush.bf16.msra.mxu0 %v466
        %496 = vmatpush.bf16.msra.mxu0 %v465
        %497 = vmatpush.bf16.msra.mxu0 %v464
        %498 = vmatpush.bf16.msra.mxu0 %v463
        %499 = vmatpush.bf16.msra.mxu0 %v462
        %500 = vmatpush.bf16.msra.mxu0 %v461
        %501 = vmatmul.bf16.gmra.mxu0 %v365
        %v502 = vpop.f32.mrf.mxu0
        %v503 = vadd.f32 0.0, %v502
        %v504 = vpop.f32.mrf.mxu0
        %v505 = vadd.f32 0.0, %v504
        %506 = vmatmul.bf16.gmra.mxu0 %v367
        %v507 = vpop.f32.mrf.mxu0
        %v508 = vadd.f32 0.0, %v507
        %v509 = vpop.f32.mrf.mxu0
        %v510 = vadd.f32 0.0, %v509
        %511 = vmatmul.bf16.gmra.mxu0 %v369
        %v512 = vpop.f32.mrf.mxu0
        %v513 = vadd.f32 0.0, %v512
        %v514 = vpop.f32.mrf.mxu0
        %v515 = vadd.f32 0.0, %v514
        %516 = vmatmul.bf16.gmra.mxu0 %v371
        %v517 = vpop.f32.mrf.mxu0
        %v518 = vadd.f32 0.0, %v517
        %v519 = vpop.f32.mrf.mxu0
        %v520 = vadd.f32 0.0, %v519
        %521 = vmatmul.bf16.gmra.mxu0 %v373
        %v522 = vpop.f32.mrf.mxu0
        %v523 = vadd.f32 0.0, %v522
        %v524 = vpop.f32.mrf.mxu0
        %v525 = vadd.f32 0.0, %v524
        %526 = vmatmul.bf16.gmra.mxu0 %v375
        %v527 = vpop.f32.mrf.mxu0
        %v528 = vadd.f32 0.0, %v527
        %v529 = vpop.f32.mrf.mxu0
        %v530 = vadd.f32 0.0, %v529
        %531 = vmatmul.bf16.gmra.mxu0 %v377
        %v532 = vpop.f32.mrf.mxu0
        %v533 = vadd.f32 0.0, %v532
        %v534 = vpop.f32.mrf.mxu0
        %v535 = vadd.f32 0.0, %v534
        %536 = vmatmul.bf16.gmra.mxu0 %v379
        %v537 = vpop.f32.mrf.mxu0
        %v538 = vadd.f32 0.0, %v537
        %v539 = vpop.f32.mrf.mxu0
        %v540 = vadd.f32 0.0, %v539
        %541 = vdwg.mxu0
        %542 = vmatpush.bf16.msra.mxu0 %v476
        %543 = vmatpush.bf16.msra.mxu0 %v475
        %544 = vmatpush.bf16.msra.mxu0 %v474
        %545 = vmatpush.bf16.msra.mxu0 %v473
        %546 = vmatpush.bf16.msra.mxu0 %v472
        %547 = vmatpush.bf16.msra.mxu0 %v471
        %548 = vmatpush.bf16.msra.mxu0 %v470
        %549 = vmatpush.bf16.msra.mxu0 %v469
        %550 = vmatmul.bf16.gmra.mxu0 %v366
        %v551 = vpop.f32.mrf.mxu0
        %v552 = vadd.f32 %v503, %v551
        %v553 = vpop.f32.mrf.mxu0
        %v554 = vadd.f32 %v505, %v553
        %555 = vmatmul.bf16.gmra.mxu0 %v368
        %v556 = vpop.f32.mrf.mxu0
        %v557 = vadd.f32 %v508, %v556
        %v558 = vpop.f32.mrf.mxu0
        %v559 = vadd.f32 %v510, %v558
        %560 = vmatmul.bf16.gmra.mxu0 %v370
        %v561 = vpop.f32.mrf.mxu0
        %v562 = vadd.f32 %v513, %v561
        %v563 = vpop.f32.mrf.mxu0
        %v564 = vadd.f32 %v515, %v563
        %565 = vmatmul.bf16.gmra.mxu0 %v372
        %v566 = vpop.f32.mrf.mxu0
        %v567 = vadd.f32 %v518, %v566
        %v568 = vpop.f32.mrf.mxu0
        %v569 = vadd.f32 %v520, %v568
        %570 = vmatmul.bf16.gmra.mxu0 %v374
        %v571 = vpop.f32.mrf.mxu0
        %v572 = vadd.f32 %v523, %v571
        %v573 = vpop.f32.mrf.mxu0
        %v574 = vadd.f32 %v525, %v573
        %575 = vmatmul.bf16.gmra.mxu0 %v376
        %v576 = vpop.f32.mrf.mxu0
        %v577 = vadd.f32 %v528, %v576
        %v578 = vpop.f32.mrf.mxu0
        %v579 = vadd.f32 %v530, %v578
        %580 = vmatmul.bf16.gmra.mxu0 %v378
        %v581 = vpop.f32.mrf.mxu0
        %v582 = vadd.f32 %v533, %v581
        %v583 = vpop.f32.mrf.mxu0
        %v584 = vadd.f32 %v535, %v583
        %585 = vmatmul.bf16.gmra.mxu0 %v380
        %v586 = vpop.f32.mrf.mxu0
        %v587 = vadd.f32 %v538, %v586
        %v588 = vpop.f32.mrf.mxu0
        %v589 = vadd.f32 %v540, %v588
        %590 = vdwg.mxu0
        %v591 = vadd.f32 %v285, %v552
        %v592 = vadd.f32 %v286, %v554
        %v593 = vadd.f32 %v287, %v557
        %v594 = vadd.f32 %v288, %v559
        %v595 = vadd.f32 %v289, %v562
        %v596 = vadd.f32 %v290, %v564
        %v597 = vadd.f32 %v291, %v567
        %v598 = vadd.f32 %v292, %v569
        %v599 = vadd.f32 %v293, %v572
        %v600 = vadd.f32 %v294, %v574
        %v601 = vadd.f32 %v295, %v577
        %v602 = vadd.f32 %v296, %v579
        %v603 = vadd.f32 %v297, %v582
        %v604 = vadd.f32 %v298, %v584
        %v605 = vadd.f32 %v299, %v587
        %v606 = vadd.f32 %v300, %v589
        %607 = vst [vmem:[%s224] sm:$0xff] %v591
        %608 = vst [vmem:[%s224 + $0x8] sm:$0xff] %v592
        %609 = vst [vmem:[%s224 + $0x10] sm:$0xff] %v593
        %610 = vst [vmem:[%s224 + $0x18] sm:$0xff] %v594
        %611 = vst [vmem:[%s224 + $0x20] sm:$0xff] %v595
        %612 = vst [vmem:[%s224 + $0x28] sm:$0xff] %v596
        %613 = vst [vmem:[%s224 + $0x30] sm:$0xff] %v597
        %614 = vst [vmem:[%s224 + $0x38] sm:$0xff] %v598
        %615 = vst [vmem:[%s224 + $0x40] sm:$0xff] %v599
        %616 = vst [vmem:[%s224 + $0x48] sm:$0xff] %v600
        %617 = vst [vmem:[%s224 + $0x50] sm:$0xff] %v601
        %618 = vst [vmem:[%s224 + $0x58] sm:$0xff] %v602
        %619 = vst [vmem:[%s224 + $0x60] sm:$0xff] %v603
        %620 = vst [vmem:[%s224 + $0x68] sm:$0xff] %v604
        %621 = vst [vmem:[%s224 + $0x70] sm:$0xff] %v605
        %622 = vst [vmem:[%s224 + $0x78] sm:$0xff] %v606
        // Predicated region
        $region45: #{tpu_custom_call.1} parent=31 // pred_check
          %p623 = pneg %p228
        $region46: #{tpu_custom_call.1} parent=31 // pred_check_branch
          %625 = sbr.rel (%p623) target = $region48
        $region47: #{tpu_custom_call.1} parent=31 // pred_region
          %v626 = vld [vmem:[%s224] sm:$0xff]
          %v627 = vld [vmem:[%s224 + $0x8] sm:$0xff]
          %v628 = vld [vmem:[%s224 + $0x10] sm:$0xff]
          %v629 = vld [vmem:[%s224 + $0x18] sm:$0xff]
          %v630 = vld [vmem:[%s224 + $0x20] sm:$0xff]
          %v631 = vld [vmem:[%s224 + $0x28] sm:$0xff]
          %v632 = vld [vmem:[%s224 + $0x30] sm:$0xff]
          %v633 = vld [vmem:[%s224 + $0x38] sm:$0xff]
          %v634 = vld [vmem:[%s224 + $0x40] sm:$0xff]
          %v635 = vld [vmem:[%s224 + $0x48] sm:$0xff]
          %v636 = vld [vmem:[%s224 + $0x50] sm:$0xff]
          %v637 = vld [vmem:[%s224 + $0x58] sm:$0xff]
          %v638 = vld [vmem:[%s224 + $0x60] sm:$0xff]
          %v639 = vld [vmem:[%s224 + $0x68] sm:$0xff]
          %v640 = vld [vmem:[%s224 + $0x70] sm:$0xff]
          %v641 = vld [vmem:[%s224 + $0x78] sm:$0xff]
          %s642 = smul.u32 %s25, 128
          %s643 = sshra.s32 %s642, 3
          %s644 = sand.u32 %s642, 7
          %s645 = smul.addr %s643, 4
          %s646 = scalar_lea.vmem [#allocation5], %s645
          %v647 = vld [vmem:[%s646] sm:$0xf]
          %v648 = vld [vmem:[%s646 + $0x4] sm:$0xf]
          %v649 = vld [vmem:[%s646 + $0x8] sm:$0xf]
          %v650 = vld [vmem:[%s646 + $0xc] sm:$0xf]
          %v651 = vld [vmem:[%s646 + $0x10] sm:$0xf]
          %v652 = vld [vmem:[%s646 + $0x14] sm:$0xf]
          %v653 = vld [vmem:[%s646 + $0x18] sm:$0xf]
          %v654 = vld [vmem:[%s646 + $0x1c] sm:$0xf]
          %v655 = vld [vmem:[%s646 + $0x20] sm:$0xf]
          %v656 = vld [vmem:[%s646 + $0x24] sm:$0xf]
          %v657 = vld [vmem:[%s646 + $0x28] sm:$0xf]
          %v658 = vld [vmem:[%s646 + $0x2c] sm:$0xf]
          %v659 = vld [vmem:[%s646 + $0x30] sm:$0xf]
          %v660 = vld [vmem:[%s646 + $0x34] sm:$0xf]
          %v661 = vld [vmem:[%s646 + $0x38] sm:$0xf]
          %v662 = vld [vmem:[%s646 + $0x3c] sm:$0xf]
          %v663 = vunpack.c.l.bf16 %v647
          %v664 = vunpack.c.l.bf16 %v648
          %v665 = vunpack.c.l.bf16 %v649
          %v666 = vunpack.c.l.bf16 %v650
          %v667 = vunpack.c.l.bf16 %v651
          %v668 = vunpack.c.l.bf16 %v652
          %v669 = vunpack.c.l.bf16 %v653
          %v670 = vunpack.c.l.bf16 %v654
          %v671 = vunpack.c.l.bf16 %v655
          %v672 = vunpack.c.l.bf16 %v656
          %v673 = vunpack.c.l.bf16 %v657
          %v674 = vunpack.c.l.bf16 %v658
          %v675 = vunpack.c.l.bf16 %v659
          %v676 = vunpack.c.l.bf16 %v660
          %v677 = vunpack.c.l.bf16 %v661
          %v678 = vunpack.c.l.bf16 %v662
          %v679 = vadd.f32 %v626, %v663
          %v680 = vadd.f32 %v627, %v664
          %v681 = vadd.f32 %v628, %v665
          %v682 = vadd.f32 %v629, %v666
          %v683 = vadd.f32 %v630, %v667
          %v684 = vadd.f32 %v631, %v668
          %v685 = vadd.f32 %v632, %v669
          %v686 = vadd.f32 %v633, %v670
          %v687 = vadd.f32 %v634, %v671
          %v688 = vadd.f32 %v635, %v672
          %v689 = vadd.f32 %v636, %v673
          %v690 = vadd.f32 %v637, %v674
          %v691 = vadd.f32 %v638, %v675
          %v692 = vadd.f32 %v639, %v676
          %v693 = vadd.f32 %v640, %v677
          %v694 = vadd.f32 %v641, %v678
          %v695 = vld [vmem:[%s2] sm:$0x1]
          %v697 = vperm.slane %v695, 0
          %v699 = vadd.f32 %v679, %v697
          %v700 = vadd.f32 %v680, %v697
          %v701 = vadd.f32 %v681, %v697
          %v702 = vadd.f32 %v682, %v697
          %v703 = vadd.f32 %v683, %v697
          %v704 = vadd.f32 %v684, %v697
          %v705 = vadd.f32 %v685, %v697
          %v706 = vadd.f32 %v686, %v697
          %v707 = vadd.f32 %v687, %v697
          %v708 = vadd.f32 %v688, %v697
          %v709 = vadd.f32 %v689, %v697
          %v710 = vadd.f32 %v690, %v697
          %v711 = vadd.f32 %v691, %v697
          %v712 = vadd.f32 %v692, %v697
          %v713 = vadd.f32 %v693, %v697
          %v714 = vadd.f32 %v694, %v697
          %v715 = vmax.f32 %v699, 0.0
          %v716 = vmax.f32 %v700, 0.0
          %v717 = vmax.f32 %v701, 0.0
          %v718 = vmax.f32 %v702, 0.0
          %v719 = vmax.f32 %v703, 0.0
          %v720 = vmax.f32 %v704, 0.0
          %v721 = vmax.f32 %v705, 0.0
          %v722 = vmax.f32 %v706, 0.0
          %v723 = vmax.f32 %v707, 0.0
          %v724 = vmax.f32 %v708, 0.0
          %v725 = vmax.f32 %v709, 0.0
          %v726 = vmax.f32 %v710, 0.0
          %v727 = vmax.f32 %v711, 0.0
          %v728 = vmax.f32 %v712, 0.0
          %v729 = vmax.f32 %v713, 0.0
          %v730 = vmax.f32 %v714, 0.0
          %731 = vst [vmem:[%s224] sm:$0xff] %v715
          %732 = vst [vmem:[%s224 + $0x8] sm:$0xff] %v716
          %733 = vst [vmem:[%s224 + $0x10] sm:$0xff] %v717
          %734 = vst [vmem:[%s224 + $0x18] sm:$0xff] %v718
          %735 = vst [vmem:[%s224 + $0x20] sm:$0xff] %v719
          %736 = vst [vmem:[%s224 + $0x28] sm:$0xff] %v720
          %737 = vst [vmem:[%s224 + $0x30] sm:$0xff] %v721
          %738 = vst [vmem:[%s224 + $0x38] sm:$0xff] %v722
          %739 = vst [vmem:[%s224 + $0x40] sm:$0xff] %v723
          %740 = vst [vmem:[%s224 + $0x48] sm:$0xff] %v724
          %741 = vst [vmem:[%s224 + $0x50] sm:$0xff] %v725
          %742 = vst [vmem:[%s224 + $0x58] sm:$0xff] %v726
          %743 = vst [vmem:[%s224 + $0x60] sm:$0xff] %v727
          %744 = vst [vmem:[%s224 + $0x68] sm:$0xff] %v728
          %745 = vst [vmem:[%s224 + $0x70] sm:$0xff] %v729
          %746 = vst [vmem:[%s224 + $0x78] sm:$0xff] %v730
        $region48: #{tpu_custom_call.1} parent=31 // pred_fallthru
          _
        %s747 = sand.u32 %s111, 1
        %s748 = scalar_lea.sflag [#allocation4], %s747
        %s749 = sand.u32 %s111, 1
        %s750 = smul.addr %s749, 128
        %s751 = scalar_lea.vmem [#allocation7], %s750
        // Predicated region
        $region49: #{tpu_custom_call.1} parent=31 // pred_check
          %p752 = pneg %p121
        $region50: #{tpu_custom_call.1} parent=31 // pred_check_branch
          %754 = sbr.rel (%p752) target = $region52
        $region51: #{tpu_custom_call.1} parent=31 // pred_region
          %s755 = smul.u32 16, %s25
          %757 = vsyncadd %s748, 0
          %s758 = smul.addr %s755, 8
          %s759 = scalar_lea.hbm %s3, %s758
          %s760 = sshll.u32 %s751, 4
          %s761 = int_to_ptr.vmem [resolvable:$true] %s760
          %s762 = sshll.u32 %s759, 4
          %s763 = int_to_ptr.hbm [resolvable:$true] %s762
          %768 = dma.vmem_to_hbm [thread:$0]  %s761, 2048, %s763, %s748, 128, 128, 8
        $region52: #{tpu_custom_call.1} parent=31 // pred_fallthru
          _
      $region32: #{tpu_custom_call.1} parent=5 // pred_fallthru
        _
      %p769 = scmp.le.s32.totalorder 2, %s16
      // Predicated region
      $region53: #{tpu_custom_call.1} parent=5 // pred_check
        %p770 = pneg %p769
      $region54: #{tpu_custom_call.1} parent=5 // pred_check_branch
        %772 = sbr.rel (%p770) target = $region56
      $region55: #{tpu_custom_call.1} parent=5 // pred_region
        %s773 = ssub.s32 %s16, 2
        // Predicated region
        $region57: #{tpu_custom_call.1} parent=55 // pred_check
          %p774 = pneg %p127
        $region58: #{tpu_custom_call.1} parent=55 // pred_check_branch
          %776 = sbr.rel (%p774) target = $region60
        $region59: #{tpu_custom_call.1} parent=55 // pred_region
          %s777 = sand.u32 %s112, 1
          %s778 = scalar_lea.sflag [#allocation4], %s777
          %s779 = sand.u32 %s112, 1
          %s780 = smul.addr %s779, 128
          %s781 = scalar_lea.vmem [#allocation7], %s780
          %783 = dma.done %s778, 2048
        $region60: #{tpu_custom_call.1} parent=55 // pred_fallthru
          _
      $region56: #{tpu_custom_call.1} parent=5 // pred_fallthru
        _
    $region6: #{tpu_custom_call.1} parent=1 // loop_footer
      %s20 = sadd.s32 1, %s16
    $region7: #{tpu_custom_call.1} parent=1 // loop_footer_branch
      %15 = sbr.rel target = $region3
    $region8: #{tpu_custom_call.1} parent=1 // loop_exit
      _
    %784 = vsyncpa [#allocation3], 1
    %s785 = scalar_lea.sflag [#allocation3], 1
    %786 = vsyncpa %s785, 1
    %787 = vsyncpa [#allocation6], 1
    %788 = vsyncpa [#allocation4], 1
    %s789 = scalar_lea.sflag [#allocation4], 1
    %790 = vsyncpa %s789, 1

</llo_original>
